<compile_context>
chip_gen: v6e
topology: v6e:2x2x1
jax: 0.10.0
libtpu: 0.0.40
codegen_flags: <defaults>
</compile_context>

<pallas_src>
import jax
import jax.numpy as jnp
from jax.experimental import pallas as pl
from jax.experimental.pallas import tpu as pltpu


def _round_up(x, m):
    return ((x + m - 1) // m) * m


# ----------------------------- kernels ---------------------------------------


def _fh_kernel_single(x_ref, w_ref, b_ref, o_ref):
    # Single K tile: plain GEMM + bias, written straight to the output block.
    o_ref[...] = (jnp.dot(x_ref[...], w_ref[...],
                          preferred_element_type=jnp.float32)
                  + b_ref[...]).astype(o_ref.dtype)


def _fh_kernel_multi_inplace(x_ref, w_ref, b_ref, o_ref):
    # f32 output block is resident across the K axis -> accumulate in place.
    @pl.when(pl.program_id(2) == 0)
    def _():
        o_ref[...] = jnp.broadcast_to(b_ref[...], o_ref.shape)

    o_ref[...] += jnp.dot(x_ref[...], w_ref[...],
                          preferred_element_type=jnp.float32)


def _fh_kernel_multi_scratch(x_ref, w_ref, b_ref, o_ref, acc_ref):
    # Narrow output dtype: accumulate in an f32 VMEM scratch, cast once at the end.
    k = pl.program_id(2)

    @pl.when(k == 0)
    def _():
        acc_ref[...] = jnp.broadcast_to(b_ref[...], acc_ref.shape)

    acc_ref[...] += jnp.dot(x_ref[...], w_ref[...],
                            preferred_element_type=jnp.float32)

    @pl.when(k == pl.num_programs(2) - 1)
    def _():
        o_ref[...] = acc_ref[...].astype(o_ref.dtype)


# ----------------------------- wrapper ----------------------------------------


def _vmem_budget_bytes():
    # Physical VMEM differs per generation (v5e/v6e: 128 MiB, v7x: 64 MiB/TC).
    try:
        cap = int(pltpu.get_tpu_info().vmem_capacity_bytes)
    except Exception:  # query unavailable (e.g. interpret mode / old runtime)
        cap = 64 * 1024 * 1024
    # Leave headroom for compiler-internal scratch and DMA descriptors.
    return int(0.6 * cap)


def make_flatten_head(weight, bias, *, head_dropout=0.0, compute_dtype=None,
                      tm_cap=512, tn_cap=512, tk_cap=2048):
    """Build the Flatten_Head forward.

    weight: [pred_len, seq_len*d_model] (torch nn.Linear layout); bias: [pred_len].
    The one-time weight transpose to (K, N) and the weight/bias padding happen
    here, hoisted out of the per-call hot path.
    """
    if head_dropout != 0.0:
        # TODO(synk): implement in-kernel dropout via pltpu.prng_seed/prng_random_bits.
        raise NotImplementedError("Flatten_Head Pallas kernel supports head_dropout=0 only.")

    N, K = weight.shape
    w_dtype = compute_dtype if compute_dtype is not None else weight.dtype

    # ---- N / K tile sizes (multiples of 128, lane-dense output) ----
    tn = min(tn_cap, _round_up(N, 128))
    np_init = _round_up(N, 128)
    if np_init >= 256:
        # Keep >= 2 output tiles along N so both v7x TensorCores get work even
        # when M fits in a single tile (total W bytes streamed are unchanged).
        tn = min(tn, max(128, (np_init // 2) // 128 * 128))
    Np = _round_up(N, tn)

    tk = min(tk_cap, _round_up(K, 128))
    Kp = _round_up(K, tk)
    grid_k = Kp // tk

    # ---- one-time weight/bias prep: MXU-native (K, N) layout + zero padding ----
    w_kn = jnp.asarray(weight, dtype=w_dtype).T
    if (Kp, Np) != (K, N):
        w_kn = jnp.pad(w_kn, ((0, Kp - K), (0, Np - N)))
    b2d = jnp.asarray(bias, dtype=jnp.float32).reshape(1, N)
    if Np != N:
        b2d = jnp.pad(b2d, ((0, 0), (0, Np - N)))
    w_kn = jax.device_put(w_kn)
    b2d = jax.device_put(b2d)

    vmem_budget = _vmem_budget_bytes()

    def forward(x):
        *lead, seq_len, d_model = x.shape
        if seq_len * d_model != K:
            raise ValueError("x trailing dims do not match Linear in_features")
        out_dtype = x.dtype
        M = 1
        for d in lead:
            M *= d

        # flatten(start_dim=-2) + merge leading dims into one row axis.
        x2d = x.reshape(M, K)
        if compute_dtype is not None and x2d.dtype != compute_dtype:
            x2d = x2d.astype(compute_dtype)

        x_isz = jnp.dtype(x2d.dtype).itemsize
        w_isz = jnp.dtype(w_kn.dtype).itemsize
        o_isz = jnp.dtype(out_dtype).itemsize

        sub = 16 if x_isz < 4 else 8          # sublane packing multiple
        tm = min(tm_cap, _round_up(M, sub))

        multi_k = grid_k > 1
        use_scratch = multi_k and out_dtype != jnp.float32

        def vmem_need(tm_):
            n = 2 * (tm_ * tk * x_isz + tk * tn * w_isz + tm_ * tn * o_isz + tn * 4)
            if use_scratch:
                n += tm_ * tn * 4
            return n

        while vmem_need(tm) > vmem_budget and tm > sub:
            tm = max(sub, _round_up(tm // 2, sub))

        Mp = _round_up(M, tm)
        if Mp != M or Kp != K:
            # Only the activation is padded per call (zeros contribute nothing).
            x2d = jnp.pad(x2d, ((0, Mp - M), (0, Kp - K)))

        grid_m, grid_n = Mp // tm, Np // tn
        vmem_limit = int(min(max(int(1.5 * vmem_need(tm)), 16 * 1024 * 1024),
                             vmem_budget))

        cost = pl.CostEstimate(
            flops=2 * Mp * Np * Kp,
            transcendentals=0,
            bytes_accessed=(Mp * Kp * x_isz + grid_m * Kp * Np * w_isz
                            + Mp * Np * o_isz + Np * 4),
        )

        if not multi_k:
            grid = (grid_m, grid_n)
            in_specs = [
                pl.BlockSpec((tm, tk), lambda i, j: (i, 0)),    # X
                pl.BlockSpec((tk, tn), lambda i, j: (0, j)),    # W (K, N) layout
                pl.BlockSpec((1, tn), lambda i, j: (0, j)),     # bias
            ]
            out_spec = pl.BlockSpec((tm, tn), lambda i, j: (i, j))
            kernel = _fh_kernel_single
            scratch = []
            sem = ("parallel", "parallel")
        else:
            grid = (grid_m, grid_n, grid_k)                     # reduction axis last
            in_specs = [
                pl.BlockSpec((tm, tk), lambda i, j, k: (i, k)),
                pl.BlockSpec((tk, tn), lambda i, j, k: (k, j)),
                pl.BlockSpec((1, tn), lambda i, j, k: (0, j)),
            ]
            out_spec = pl.BlockSpec((tm, tn), lambda i, j, k: (i, j))
            if use_scratch:
                kernel = _fh_kernel_multi_scratch
                scratch = [pltpu.VMEM((tm, tn), jnp.float32)]
            else:
                kernel = _fh_kernel_multi_inplace
                scratch = []
            sem = ("parallel", "parallel", "arbitrary")

        out2d = pl.pallas_call(
            kernel,
            out_shape=jax.ShapeDtypeStruct((Mp, Np), out_dtype),
            grid_spec=pltpu.PrefetchScalarGridSpec(
                num_scalar_prefetch=0,
                grid=grid,
                in_specs=in_specs,
                out_specs=out_spec,
                scratch_shapes=scratch,
            ),
            compiler_params=pltpu.CompilerParams(
                dimension_semantics=sem,
                vmem_limit_bytes=vmem_limit,
            ),
            cost_estimate=cost,
        )(x2d, w_kn, b2d)

        # Slice off padding, restore leading dims. Dropout(p=0) is the identity.
        return out2d[:M, :N].reshape(*lead, N)

    return forward


def _reference(x, weight, bias):
    *lead, seq_len, d_model = x.shape
    xf = x.reshape(*lead, seq_len * d_model)
    return jnp.einsum("...k,nk->...n", xf, weight) + bias


if __name__ == "__main__":
    # Module-consistent small shapes: batch=2, n_vars=4, seq_len=8, d_model=32,
    # pred_len=16, head_dropout=0.
    batch, n_vars, seq_len, d_model, pred_len = 2, 4, 8, 32, 16
    K = seq_len * d_model

    key = jax.random.PRNGKey(0)
    kx, kw, kb = jax.random.split(key, 3)

    x = jax.random.normal(kx, (batch, n_vars, seq_len, d_model), dtype=jnp.float32)
    # Deterministic init mimicking nn.Linear's uniform(-1/sqrt(K), 1/sqrt(K)).
    bound = 1.0 / jnp.sqrt(jnp.float32(K))
    weight = jax.random.uniform(kw, (pred_len, K), minval=-bound, maxval=bound,
                                dtype=jnp.float32)
    bias = jax.random.uniform(kb, (pred_len,), minval=-bound, maxval=bound,
                              dtype=jnp.float32)

    ref = _reference(x, weight, bias)

    # Exact-dtype path (matches the PyTorch module's f32 forward).
    forward = make_flatten_head(weight, bias)
    out = jax.block_until_ready(forward(x))
    assert out.shape == (batch, n_vars, pred_len), out.shape
    assert jnp.allclose(out, ref, atol=1e-5, rtol=1e-5), "f32 mismatch vs reference"

    # bf16-operand path (f32 accumulation) — the weight-HBM-bound fast path on v5e/v6e.
    forward_bf16 = make_flatten_head(weight, bias, compute_dtype=jnp.bfloat16)
    out_bf16 = jax.block_until_ready(forward_bf16(x))
    assert out_bf16.shape == (batch, n_vars, pred_len), out_bf16.shape
    assert jnp.allclose(out_bf16, ref, atol=3e-2, rtol=3e-2), "bf16 mismatch vs reference"

    print("KERNEL_OK")
</pallas_src>

<mosaic_0001>
module attributes {stable_mosaic.version = 11 : i64} {
  func.func @_fh_kernel_single(%arg0: i32, %arg1: i32, %arg2: memref<8x256xf32, #tpu.memory_space<vmem>>, %arg3: memref<256x128xf32, #tpu.memory_space<vmem>>, %arg4: memref<1x128xf32, #tpu.memory_space<vmem>>, %arg5: memref<8x128xf32, #tpu.memory_space<vmem>>) attributes {dimension_semantics = [#tpu.dimension_semantics<parallel>, #tpu.dimension_semantics<parallel>], iteration_bounds = array<i64: 1, 1>, scalar_prefetch = 0 : i64, scratch_operands = 0 : i64, tpu.core_type = #tpu.core_type<tc>, window_params = [{transform_indices = @transform_0, window_bounds = array<i64: 8, 256>}, {transform_indices = @transform_1, window_bounds = array<i64: 256, 128>}, {transform_indices = @transform_2, window_bounds = array<i64: 1, 128>}, {transform_indices = @transform_3, window_bounds = array<i64: 8, 128>}]} {
    %c0 = arith.constant 0 : index
    %c0_0 = arith.constant 0 : index
    %0 = vector.load %arg2[%c0, %c0_0] : memref<8x256xf32, #tpu.memory_space<vmem>>, vector<8x256xf32>
    %c0_1 = arith.constant 0 : index
    %c0_2 = arith.constant 0 : index
    %1 = vector.load %arg3[%c0_1, %c0_2] : memref<256x128xf32, #tpu.memory_space<vmem>>, vector<256x128xf32>
    %cst = arith.constant dense<0.000000e+00> : vector<8x128xf32>
    %2 = tpu.matmul %0, %1, %cst {dimension_numbers = #tpu.dot_dimension_numbers<[1], [0], [0], [1], [0, 0, 1, 1], [], []>} : vector<8x256xf32>, vector<256x128xf32>, vector<8x128xf32> -> vector<8x128xf32>
    %c0_3 = arith.constant 0 : index
    %c0_4 = arith.constant 0 : index
    %3 = vector.load %arg4[%c0_3, %c0_4] : memref<1x128xf32, #tpu.memory_space<vmem>>, vector<1x128xf32>
    %4 = vector.broadcast %3 : vector<1x128xf32> to vector<8x128xf32>
    %5 = arith.addf %2, %4 : vector<8x128xf32>
    %c0_5 = arith.constant 0 : index
    %c0_6 = arith.constant 0 : index
    %6 = vector.load %arg5[%c0_5, %c0_6] : memref<8x128xf32, #tpu.memory_space<vmem>>, vector<8x128xf32>
    tpu.vector_store %arg5[%c0_5, %c0_6], %5 {strides = array<i32>} : memref<8x128xf32, #tpu.memory_space<vmem>>, vector<8x128xf32>,
    return
  }
  func.func @transform_0(%arg0: i32, %arg1: i32) -> (i32, i32) {
    %c0_i32 = arith.constant 0 : i32
    %c0_i32_0 = arith.constant 0 : i32
    return %arg0, %c0_i32 : i32, i32
  }
  func.func @transform_1(%arg0: i32, %arg1: i32) -> (i32, i32) {
    %c0_i32 = arith.constant 0 : i32
    %c0_i32_0 = arith.constant 0 : i32
    return %c0_i32, %arg1 : i32, i32
  }
  func.func @transform_2(%arg0: i32, %arg1: i32) -> (i32, i32) {
    %c0_i32 = arith.constant 0 : i32
    %c0_i32_0 = arith.constant 0 : i32
    return %c0_i32, %arg1 : i32, i32
  }
  func.func @transform_3(%arg0: i32, %arg1: i32) -> (i32, i32) {
    %c0_i32 = arith.constant 0 : i32
    return %arg0, %arg1 : i32, i32
  }
}

</mosaic_0001>

<llo_original>
// kernel: tpu_custom_call.1
$region0: #{tpu_custom_call.1}
  #allocation0 [shape = 'u32[]', space=smem, size = 0x4, offset = 0x4, fixed_abs, tag = 'smem constant byte address 0x4 - core index']
  #allocation1 [shape = 'u32[144,128]{1,0:T(1,128)}', space=vmem, size = 0x12000, scoped, tag = 'internal scratch']
  %s0 = inlined_call_operand.hbm [shape: f32[8,256], index: 0, kind: input, shape index: {}]
  %s1 = inlined_call_operand.hbm [shape: f32[256,128], index: 1, kind: input, shape index: {}]
  %s2 = inlined_call_operand.vmem [shape: f32[1,128], index: 2, kind: input, shape index: {}]
  %s3 = inlined_call_operand.hbm [shape: f32[8,128], index: 3, kind: output, shape index: {}]
  %s4 = sld [smem:[#allocation0]]
  $region30: #{tpu_custom_call.1} parent=0
    _
  %s6 = ssub.s32 1, %s4
  %s7 = scalar_select 0, %s6, %s4
  $region1: #{tpu_custom_call.1} parent=0
    #allocation2 [shape = 'u8[8192]{0}', space=vmem, size = 0x2000, scoped, tag = 'input window, operand 0, single buffered']
    #allocation3 [shape = 's32[1]{0}', space=sflag, size = 0x4, scoped, tag = 'scoped memory for tpu_custom_call.1']
    #allocation4 [shape = 's32[1]{0}', space=sflag, size = 0x4, scoped, tag = 'scoped memory for tpu_custom_call.1']
    #allocation5 [shape = 'u8[131072]{0}', space=vmem, size = 0x20000, scoped, tag = 'input window, operand 1, single buffered']
    #allocation6 [shape = 's32[1]{0}', space=sflag, size = 0x4, scoped, tag = 'scoped memory for tpu_custom_call.1']
    #allocation7 [shape = 'u8[4096]{0}', space=vmem, size = 0x1000, scoped, tag = 'output window, operand 0, single buffered']
    %8 = vsyncpa [#allocation3], 0
    %9 = vsyncpa [#allocation6], 0
    %10 = vsyncpa [#allocation4], 0
    // Predicated region
    $region2: #{tpu_custom_call.1} parent=1 // pred_check
      _
    $region3: #{tpu_custom_call.1} parent=1 // pred_check_branch
      %12 = sbr.rel (0) target = $region5
    $region4: #{tpu_custom_call.1} parent=1 // pred_region
      %s14 = ssub.s32 256, 256
      %15 = vsyncadd [#allocation3], %s14
      %s17 = sshll.u32 [#allocation2], 4
      %s18 = int_to_ptr.vmem [resolvable:$true] %s17
      %20 = dma.hbm_to_vmem [thread:$0]  %s0, 256, %s18, [#allocation3]
    $region5: #{tpu_custom_call.1} parent=1 // pred_fallthru
      _
    // Predicated region
    $region6: #{tpu_custom_call.1} parent=1 // pred_check
      _
    $region7: #{tpu_custom_call.1} parent=1 // pred_check_branch
      %22 = sbr.rel (0) target = $region9
    $region8: #{tpu_custom_call.1} parent=1 // pred_region
      %s24 = ssub.s32 4096, 4096
      %25 = vsyncadd [#allocation6], %s24
      %s26 = sshll.u32 [#allocation5], 4
      %s27 = int_to_ptr.vmem [resolvable:$true] %s26
      %32 = dma.hbm_to_vmem [thread:$0]  %s1, 4096, %s27, [#allocation6], 128, 128, 8
    $region9: #{tpu_custom_call.1} parent=1 // pred_fallthru
      _
    // Predicated region
    $region10: #{tpu_custom_call.1} parent=1 // pred_check
      _
    $region11: #{tpu_custom_call.1} parent=1 // pred_check_branch
      %34 = sbr.rel (0) target = $region13
    $region12: #{tpu_custom_call.1} parent=1 // pred_region
      _
    $region13: #{tpu_custom_call.1} parent=1 // pred_fallthru
      _
    // Predicated region
    $region14: #{tpu_custom_call.1} parent=1 // pred_check
      _
    $region15: #{tpu_custom_call.1} parent=1 // pred_check_branch
      %36 = sbr.rel (0) target = $region17
    $region16: #{tpu_custom_call.1} parent=1 // pred_region
      %37 = dma.done [#allocation3], 256
    $region17: #{tpu_custom_call.1} parent=1 // pred_fallthru
      _
    // Predicated region
    $region18: #{tpu_custom_call.1} parent=1 // pred_check
      _
    $region19: #{tpu_custom_call.1} parent=1 // pred_check_branch
      %39 = sbr.rel (0) target = $region21
    $region20: #{tpu_custom_call.1} parent=1 // pred_region
      %40 = dma.done [#allocation6], 4096
    $region21: #{tpu_custom_call.1} parent=1 // pred_fallthru
      _
    %v41 = vld [vmem:[#allocation2] sm:$0xff]
    %v42 = vld [vmem:[#allocation2 + $0x8] sm:$0xff]
    %v43 = vld [vmem:[#allocation5] sm:$0xff]
    %v44 = vld [vmem:[#allocation5 + $0x8] sm:$0xff]
    %v45 = vld [vmem:[#allocation5 + $0x10] sm:$0xff]
    %v46 = vld [vmem:[#allocation5 + $0x18] sm:$0xff]
    %v47 = vld [vmem:[#allocation5 + $0x20] sm:$0xff]
    %v48 = vld [vmem:[#allocation5 + $0x28] sm:$0xff]
    %v49 = vld [vmem:[#allocation5 + $0x30] sm:$0xff]
    %v50 = vld [vmem:[#allocation5 + $0x38] sm:$0xff]
    %v51 = vld [vmem:[#allocation5 + $0x40] sm:$0xff]
    %v52 = vld [vmem:[#allocation5 + $0x48] sm:$0xff]
    %v53 = vld [vmem:[#allocation5 + $0x50] sm:$0xff]
    %v54 = vld [vmem:[#allocation5 + $0x58] sm:$0xff]
    %v55 = vld [vmem:[#allocation5 + $0x60] sm:$0xff]
    %v56 = vld [vmem:[#allocation5 + $0x68] sm:$0xff]
    %v57 = vld [vmem:[#allocation5 + $0x70] sm:$0xff]
    %v58 = vld [vmem:[#allocation5 + $0x78] sm:$0xff]
    %v59 = vld [vmem:[#allocation5 + $0x80] sm:$0xff]
    %v60 = vld [vmem:[#allocation5 + $0x88] sm:$0xff]
    %v61 = vld [vmem:[#allocation5 + $0x90] sm:$0xff]
    %v62 = vld [vmem:[#allocation5 + $0x98] sm:$0xff]
    %v63 = vld [vmem:[#allocation5 + $0xa0] sm:$0xff]
    %v64 = vld [vmem:[#allocation5 + $0xa8] sm:$0xff]
    %v65 = vld [vmem:[#allocation5 + $0xb0] sm:$0xff]
    %v66 = vld [vmem:[#allocation5 + $0xb8] sm:$0xff]
    %v67 = vld [vmem:[#allocation5 + $0xc0] sm:$0xff]
    %v68 = vld [vmem:[#allocation5 + $0xc8] sm:$0xff]
    %v69 = vld [vmem:[#allocation5 + $0xd0] sm:$0xff]
    %v70 = vld [vmem:[#allocation5 + $0xd8] sm:$0xff]
    %v71 = vld [vmem:[#allocation5 + $0xe0] sm:$0xff]
    %v72 = vld [vmem:[#allocation5 + $0xe8] sm:$0xff]
    %v73 = vld [vmem:[#allocation5 + $0xf0] sm:$0xff]
    %v74 = vld [vmem:[#allocation5 + $0xf8] sm:$0xff]
    %v75 = vld [vmem:[%s2] sm:$0x1]
    %v77 = vlaneseq
    %v78 = vshrl.u32 %v77, 7
    %v79 = vsub.s32 0, %v78
    %v80 = vrot.slane %v75, %v79
    %82 = vmatprep.subr.mxu0 0.0
    %83 = vmatpush1.msra.mxu0 %v58
    %84 = vmatprep.subr.mxu0 0.0
    %85 = vmatpush1.msra.mxu0 %v57
    %86 = vmatprep.subr.mxu0 0.0
    %87 = vmatpush1.msra.mxu0 %v56
    %88 = vmatprep.subr.mxu0 0.0
    %89 = vmatpush1.msra.mxu0 %v55
    %90 = vmatprep.subr.mxu0 0.0
    %91 = vmatpush1.msra.mxu0 %v54
    %92 = vmatprep.subr.mxu0 0.0
    %93 = vmatpush1.msra.mxu0 %v53
    %94 = vmatprep.subr.mxu0 0.0
    %95 = vmatpush1.msra.mxu0 %v52
    %96 = vmatprep.subr.mxu0 0.0
    %97 = vmatpush1.msra.mxu0 %v51
    %98 = vmatprep.subr.mxu0 0.0
    %99 = vmatpush1.msra.mxu0 %v50
    %100 = vmatprep.subr.mxu0 0.0
    %101 = vmatpush1.msra.mxu0 %v49
    %102 = vmatprep.subr.mxu0 0.0
    %103 = vmatpush1.msra.mxu0 %v48
    %104 = vmatprep.subr.mxu0 0.0
    %105 = vmatpush1.msra.mxu0 %v47
    %106 = vmatprep.subr.mxu0 0.0
    %107 = vmatpush1.msra.mxu0 %v46
    %108 = vmatprep.subr.mxu0 0.0
    %109 = vmatpush1.msra.mxu0 %v45
    %110 = vmatprep.subr.mxu0 0.0
    %111 = vmatpush1.msra.mxu0 %v44
    %112 = vmatprep.subr.mxu0 0.0
    %113 = vmatpush1.msra.mxu0 %v43
    %114 = vmatprep.subr.mxu0 0.0
    %115 = vmatpush2.msra.mxu0 %v74
    %116 = vmatprep.subr.mxu0 0.0
    %117 = vmatpush2.msra.mxu0 %v73
    %118 = vmatprep.subr.mxu0 0.0
    %119 = vmatpush2.msra.mxu0 %v72
    %120 = vmatprep.subr.mxu0 0.0
    %121 = vmatpush2.msra.mxu0 %v71
    %122 = vmatprep.subr.mxu0 0.0
    %123 = vmatpush2.msra.mxu0 %v70
    %124 = vmatprep.subr.mxu0 0.0
    %125 = vmatpush2.msra.mxu0 %v69
    %126 = vmatprep.subr.mxu0 0.0
    %127 = vmatpush2.msra.mxu0 %v68
    %128 = vmatprep.subr.mxu0 0.0
    %129 = vmatpush2.msra.mxu0 %v67
    %130 = vmatprep.subr.mxu0 0.0
    %131 = vmatpush2.msra.mxu0 %v66
    %132 = vmatprep.subr.mxu0 0.0
    %133 = vmatpush2.msra.mxu0 %v65
    %134 = vmatprep.subr.mxu0 0.0
    %135 = vmatpush2.msra.mxu0 %v64
    %136 = vmatprep.subr.mxu0 0.0
    %137 = vmatpush2.msra.mxu0 %v63
    %138 = vmatprep.subr.mxu0 0.0
    %139 = vmatpush2.msra.mxu0 %v62
    %140 = vmatprep.subr.mxu0 0.0
    %141 = vmatpush2.msra.mxu0 %v61
    %142 = vmatprep.subr.mxu0 0.0
    %143 = vmatpush2.msra.mxu0 %v60
    %144 = vmatprep.subr.mxu0 0.0
    %145 = vmatpush2.msra.mxu0 %v59
    %146 = vmatprep.mubr.f32.mxu0 %v42
    %147 = vmatmul.mubr.f32.gmra.mxu0 %v41
    %v148 = vpop.f32.mrf.mxu0
    %v149 = vadd.f32 %v80, %v148
    %v150 = vpop.f32.mrf.mxu0
    %151 = vdwg.mxu0
    %152 = vst [vmem:[#allocation7] sm:$0xff] %v149
    // Predicated region
    $region22: #{tpu_custom_call.1} parent=1 // pred_check
      _
    $region23: #{tpu_custom_call.1} parent=1 // pred_check_branch
      %154 = sbr.rel (0) target = $region25
    $region24: #{tpu_custom_call.1} parent=1 // pred_region
      %s156 = ssub.s32 128, 128
      %157 = vsyncadd [#allocation4], %s156
      %s159 = sshll.u32 [#allocation7], 4
      %s160 = int_to_ptr.vmem [resolvable:$true] %s159
      %162 = dma.vmem_to_hbm [thread:$0]  %s160, 128, %s3, [#allocation4]
    $region25: #{tpu_custom_call.1} parent=1 // pred_fallthru
      _
    // Predicated region
    $region26: #{tpu_custom_call.1} parent=1 // pred_check
      _
    $region27: #{tpu_custom_call.1} parent=1 // pred_check_branch
      %164 = sbr.rel (0) target = $region29
    $region28: #{tpu_custom_call.1} parent=1 // pred_region
      %165 = dma.done [#allocation4], 128
    $region29: #{tpu_custom_call.1} parent=1 // pred_fallthru
      _
    %166 = vsyncpa [#allocation3], 1
    %167 = vsyncpa [#allocation6], 1
    %168 = vsyncpa [#allocation4], 1

</llo_original>
